<compile_context>
chip_gen: v7x
topology: tpu7x:2x2x1
jax: 0.10.0
libtpu: 0.0.40
codegen_flags: <defaults>
</compile_context>

<pallas_src>
import jax
import jax.numpy as jnp
from jax.experimental import pallas as pl
from jax.experimental.pallas import tpu as pltpu


# ----------------------------------------------------------------------------
# Pallas kernel: the decoder "forward" hot path.
# The abstract base class defines no computation, so the kernel is the
# identity map on X, realized as one HBM->HBM DMA (no VMEM round trip).
# A concrete subclass would replace this body with its actual decode step.
# ----------------------------------------------------------------------------
def _decoder_forward_kernel(x_hbm_ref, o_hbm_ref, copy_sem):
    # TODO(synk): base-class forward raises NotImplementedError; identity is
    # the only semantics-free concrete realization, done as a single DMA.
    cp = pltpu.make_async_copy(x_hbm_ref, o_hbm_ref, copy_sem)
    cp.start()
    cp.wait()


def _decoder_forward_pallas(x):
    """Run the (identity) decoder forward as a single HBM->HBM DMA kernel.

    Works for any shape/dtype: the DMA engine handles the whole array, so no
    (8,128) block constraints, no VMEM footprint, no per-tile budget tuning
    per TPU generation.
    """
    nbytes = x.size * jnp.dtype(x.dtype).itemsize
    return pl.pallas_call(
        _decoder_forward_kernel,
        out_shape=jax.ShapeDtypeStruct(x.shape, x.dtype),
        in_specs=[pl.BlockSpec(memory_space=pl.ANY)],
        out_specs=pl.BlockSpec(memory_space=pl.ANY),
        scratch_shapes=[pltpu.SemaphoreType.DMA(())],
        cost_estimate=pl.CostEstimate(
            flops=0, transcendentals=0, bytes_accessed=2 * nbytes),
    )(x)


# ----------------------------------------------------------------------------
# JAX-side Decoder matching the PyTorch interface.
# ----------------------------------------------------------------------------
class Decoder:
    """JAX/Pallas mirror of the abstract PyTorch Decoder base class."""

    def __init__(self, **kwargs):
        # No parameters: the reference __init__ creates no weights.
        pass

    def init_state(self, enc_outputs, *args):
        raise NotImplementedError

    def forward(self, X, state):
        raise NotImplementedError


class _ConcreteDecoder(Decoder):
    """Minimal concrete subclass so the Pallas path can be exercised.

    init_state passes encoder outputs through; forward runs the Pallas
    identity kernel on X and returns (X, state) — the unique behavior
    consistent with the (empty) base-class contract.  Note: the truly fastest
    correct forward would simply `return X, state` (zero HBM traffic); the
    single-DMA kernel is kept so an on-chip Pallas path is exercised.
    """

    def init_state(self, enc_outputs, *args):
        return enc_outputs

    def forward(self, X, state):
        return _decoder_forward_pallas(X), state


if __name__ == "__main__":
    key = jax.random.PRNGKey(0)
    k1, k2 = jax.random.split(key)

    # Small shapes consistent with a seq2seq decoder interface.
    batch, seq, hidden = 2, 8, 32
    X = jax.random.normal(k1, (batch, seq, hidden), dtype=jnp.float32)
    enc_outputs = jax.random.normal(k2, (batch, seq, hidden), dtype=jnp.float32)

    dec = _ConcreteDecoder()

    # Base-class methods must raise, exactly like the PyTorch reference.
    base = Decoder()
    for fn, args in ((base.init_state, (enc_outputs,)), (base.forward, (X, None))):
        try:
            fn(*args)
            raise AssertionError("expected NotImplementedError")
        except NotImplementedError:
            pass

    state = dec.init_state(enc_outputs)
    Y, out_state = dec.forward(X, state)
    Y = jax.block_until_ready(Y)

    # Identity semantics check (the only concrete semantics the base defines).
    assert Y.shape == X.shape and Y.dtype == X.dtype
    assert bool(jnp.allclose(Y, X))
    assert bool(jnp.allclose(out_state, enc_outputs))

    print("KERNEL_OK")
</pallas_src>

<mosaic_0001>
module attributes {stable_mosaic.version = 11 : i64} {
  func.func @_decoder_forward_kernel(%arg0: memref<2x8x32xf32, #tpu.memory_space<any>>, %arg1: memref<2x8x32xf32, #tpu.memory_space<any>>, %arg2: memref<!tpu.dma_semaphore, #tpu.memory_space<semaphore_mem>>) attributes {dimension_semantics = [], scalar_prefetch = 0 : i64, scratch_operands = 1 : i64, tpu.core_type = #tpu.core_type<tc>} {
    tpu.enqueue_dma source(%arg0 : memref<2x8x32xf32, #tpu.memory_space<any>>) target(%arg1 : memref<2x8x32xf32, #tpu.memory_space<any>>) target_semaphore(%arg2 : memref<!tpu.dma_semaphore, #tpu.memory_space<semaphore_mem>>)
    tpu.wait_dma2 semaphore(%arg2 : memref<!tpu.dma_semaphore, #tpu.memory_space<semaphore_mem>>) src(%arg0 : memref<2x8x32xf32, #tpu.memory_space<any>>) dst(%arg1 : memref<2x8x32xf32, #tpu.memory_space<any>>)
    return
  }
}

</mosaic_0001>

<llo_original>
// kernel: tpu_custom_call.1
$region0: #{tpu_custom_call.1}
  #allocation0 [shape = 'u32[]', space=smem, size = 0x4, offset = 0x4, fixed_abs, tag = 'smem constant byte address 0x4 - core index']
  #allocation1 [shape = 'u32[144,128]{1,0:T(1,128)}', space=vmem, size = 0x12000, scoped, tag = 'internal scratch']
  #allocation2 [shape = 's32[1]{0}', space=sflag, size = 0x4, scoped, tag = 'scratch operand']
  #allocation3 [shape = 's32[]', space=sflag, size = 0x4, offset = 0, fixed_abs, tag = 'sflag constant byte address 0x0 - dummy sync flag']
  #allocation4 [shape = 'u32[0]{0}', space=smem, size = 0, offset = 0, fixed_abs, tag = 'smem constant byte address 0x0 - null']
  %s0 = inlined_call_operand.hbm [shape: f32[2,8,32], index: 0, kind: input, shape index: {}]
  %s1 = inlined_call_operand.hbm [shape: f32[2,8,32], index: 1, kind: output, shape index: {}]
  %s2 = sld [smem:[#allocation0]]
  $region2: #{tpu_custom_call.1} parent=0
    _
  %s4 = ssub.s32 1, %s2
  %s5 = scalar_select 0, %s4, %s2
  %s7 = sshll.u32 1, 14
  %s8 = sxor.u32 4294967295, %s7
  %s11 = sshll.u32 3, 24
  %s12 = sxor.u32 4294967295, %s11
  %s13 = sand.u32 0, %s12
  %s15 = sor.u32 %s13, 0
  %18 = dma.general %s0, 256, %s1, [#allocation2], [#allocation3], [#allocation4], %s15, 0
  %s19 = smul.u32 2, 8
  %s20 = smul.u32 %s19, 1
  %s21 = sshll.u32 %s20, 4
  %22 = dma.done [#allocation2], %s21
  %23 = vsyncmov [#allocation2]
  %s24 = vpop.sfrf %23
  %p25 = scmp.eq.s32.totalorder %s24, 0
  %p26 = pneg %p25
  %28 = shalt.err (%p26)

</llo_original>
